<compile_context>
chip_gen: v6e
topology: v6e:2x2x1
jax: 0.10.0
libtpu: 0.0.40
codegen_flags: <defaults>
</compile_context>

<pallas_src>
import functools
import numpy as np

import jax
import jax.numpy as jnp
from jax.experimental import pallas as pl
from jax.experimental.pallas import tpu as pltpu


# ----------------------------------------------------------------------------
# BlockSpec helpers
# ----------------------------------------------------------------------------
def _vmem():
    # whole-array block, resident in VMEM (shapes in this model are small)
    return pl.BlockSpec(memory_space=pltpu.MemorySpace.VMEM)


# ----------------------------------------------------------------------------
# Pallas kernels
# ----------------------------------------------------------------------------
def _linear_kernel(x_ref, w_ref, b_ref, o_ref, *, activation):
    y = jnp.dot(x_ref[...].astype(jnp.bfloat16), w_ref[...].astype(jnp.bfloat16),
                preferred_element_type=jnp.float32) + b_ref[...]
    if activation == "relu":
        y = jnp.maximum(y, 0.0)
    o_ref[...] = y


def pallas_linear(x, w, b, activation=None, row_block=256):
    """y = x @ W + b (+ optional ReLU).  bf16 MXU operands, f32 accumulate.
    Small inputs: single VMEM block.  Large inputs: row-tiled grid, sharded
    across TensorCores ("parallel") with double-buffered pipelining."""
    m, k = x.shape
    n = w.shape[1]
    kernel = functools.partial(_linear_kernel, activation=activation)
    if m <= row_block:
        return pl.pallas_call(
            kernel,
            out_shape=jax.ShapeDtypeStruct((m, n), jnp.float32),
            in_specs=[_vmem()] * 3,
            out_specs=_vmem(),
        )(x, w, b.reshape(1, n))
    g = pl.cdiv(m, row_block)
    m_pad = g * row_block
    xp = jnp.pad(x, ((0, m_pad - m), (0, 0)))
    out = pl.pallas_call(
        kernel,
        out_shape=jax.ShapeDtypeStruct((m_pad, n), jnp.float32),
        grid=(g,),
        in_specs=[pl.BlockSpec((row_block, k), lambda i: (i, 0)),
                  pl.BlockSpec((k, n), lambda i: (0, 0)),
                  pl.BlockSpec((1, n), lambda i: (0, 0))],
        out_specs=pl.BlockSpec((row_block, n), lambda i: (i, 0)),
        compiler_params=pltpu.CompilerParams(dimension_semantics=("parallel",)),
    )(xp, w, b.reshape(1, n))
    return out[:m]


def _dense_kernel(x_ref, g_ref, bln_ref, w_ref, b_ref, o_ref):
    # LayerNorm (biased variance, eps=1e-5) -> ReLU -> Linear (bf16 matmul)
    x = x_ref[...]
    mean = jnp.mean(x, axis=-1, keepdims=True)
    c = x - mean
    var = jnp.mean(c * c, axis=-1, keepdims=True)
    xn = c * jax.lax.rsqrt(var + 1e-5)
    xn = xn * g_ref[...] + bln_ref[...]
    xn = jnp.maximum(xn, 0.0)
    o_ref[...] = jnp.dot(xn.astype(jnp.bfloat16), w_ref[...].astype(jnp.bfloat16),
                         preferred_element_type=jnp.float32) + b_ref[...]


def pallas_dense(x, ln_gamma, ln_beta, w, b):
    m, k = x.shape
    n = w.shape[1]
    return pl.pallas_call(
        _dense_kernel,
        out_shape=jax.ShapeDtypeStruct((m, n), jnp.float32),
        in_specs=[_vmem()] * 5,
        out_specs=_vmem(),
    )(x, ln_gamma.reshape(1, k), ln_beta.reshape(1, k), w, b.reshape(1, n))


def _gcn_layer_kernel(node_ref, edge_ref, wn_ref, bnp_ref, we_ref, bep_ref,
                      srcoh_ref, dstoh_en_ref, dstoh_ne_ref, indeg_ref,
                      nfac_ref, efac_ref,
                      nseg_ref, nsegT_ref, ninvn_ref, ninvnm1_ref,
                      eseg_ref, esegT_ref, einvn_ref, einvnm1_ref,
                      gamma_n_ref, beta_n_ref, gamma_e_ref, beta_e_ref,
                      node_out_ref, edge_out_ref, *, H):
    """Whole GatedGCN layer fused: projections -> message/reduce -> GraphNorms."""
    f32 = jnp.float32
    bf16 = jnp.bfloat16
    x = node_ref[...]                         # [N, H] f32
    e = edge_ref[...]                         # [E, H] f32

    # fused node projections Av|Bv|Dv|Ev : one lane-dense [N,H]@[H,4H] bf16 matmul
    proj = jnp.dot(x.astype(bf16), wn_ref[...].astype(bf16),
                   preferred_element_type=f32) + bnp_ref[...]          # [N, 4H]
    Ce = jnp.dot(e.astype(bf16), we_ref[...].astype(bf16),
                 preferred_element_type=f32) + bep_ref[...]            # [E, H]

    # gathers via 0/1 one-hot matmuls (exact in bf16):  Bv|Dv by src, Ev by dst
    bd_src = jnp.dot(srcoh_ref[...], proj[:, H:3 * H].astype(bf16),
                     preferred_element_type=f32)                       # [E, 2H]
    ev_dst = jnp.dot(dstoh_en_ref[...], proj[:, 3 * H:].astype(bf16),
                     preferred_element_type=f32)                       # [E, H]

    # DGL message: score_e = sigmoid(Dv[src] + Ce + Ev[dst]);  msg = score * Bv[src]
    score = jax.nn.sigmoid(bd_src[:, H:] + Ce + ev_dst)                # [E, H]
    msg = score * bd_src[:, :H]

    # DGL reduce: scatter-sum over destination nodes via one-hot matmul
    dst1h = dstoh_ne_ref[...]                                          # [N, E] bf16
    num = jnp.dot(dst1h, msg.astype(bf16), preferred_element_type=f32)
    den = jnp.dot(dst1h, score.astype(bf16), preferred_element_type=f32)
    h_new = proj[:, :H] + num * pl.reciprocal(den + 1e-6, approx=True)
    # zero-in-degree nodes keep their previous feature (DGL update_all semantics)
    v_new = jnp.where(indeg_ref[...] > 0, h_new, x)

    def graphnorm_relu_res(xin, factor, seg_ref, segT_ref, invn_ref, invnm1_ref,
                           gamma_ref, beta_ref, residual):
        # per-graph mean / unbiased std (torch.std), (x-mean)/(std+1e-5),
        # gamma*y+beta, ReLU, + residual  (== GatedGCN._do_norm, dropout off)
        xs = xin * factor
        seg = seg_ref[...]                    # [G, rows] membership (f32, tiny)
        segT = segT_ref[...]                  # [rows, G]
        mean_g = jnp.dot(seg, xs, preferred_element_type=f32) * invn_ref[...]
        c = xs - jnp.dot(segT, mean_g, preferred_element_type=f32)
        var_g = jnp.dot(seg, c * c, preferred_element_type=f32) * invnm1_ref[...]
        std = jnp.dot(segT, jnp.sqrt(var_g), preferred_element_type=f32)
        y = c * pl.reciprocal(std + 1e-5, approx=True)
        y = gamma_ref[...] * y + beta_ref[...]
        return jnp.maximum(y, 0.0) + residual

    node_out_ref[...] = graphnorm_relu_res(v_new, nfac_ref[...], nseg_ref, nsegT_ref,
                                           ninvn_ref, ninvnm1_ref,
                                           gamma_n_ref, beta_n_ref, x)
    # edge features pass through update_all unchanged; only norm+res applied
    edge_out_ref[...] = graphnorm_relu_res(e, efac_ref[...], eseg_ref, esegT_ref,
                                           einvn_ref, einvnm1_ref,
                                           gamma_e_ref, beta_e_ref, e)


def gated_gcn_layer(p, node_feat, edge_feat, src_oh, dst_oh_en, dst_oh_ne, indeg,
                    node_factor, edge_factor, node_aux, edge_aux, H):
    # TODO(synk): for large graphs replace the dense one-hot gather/scatter with a
    #             tiled scalar-prefetched segment-sum so VMEM stays O(E*H) (v7x 64MiB).
    N = node_feat.shape[0]
    E = edge_feat.shape[0]
    nseg, nsegT, ninvn, ninvnm1 = node_aux
    eseg, esegT, einvn, einvnm1 = edge_aux
    kernel = functools.partial(_gcn_layer_kernel, H=H)
    return pl.pallas_call(
        kernel,
        out_shape=(jax.ShapeDtypeStruct((N, H), jnp.float32),
                   jax.ShapeDtypeStruct((E, H), jnp.float32)),
        in_specs=[_vmem()] * 24,
        out_specs=(_vmem(), _vmem()),
    )(node_feat, edge_feat,
      p["w_node4"], p["b_node4"].reshape(1, 4 * H),
      p["w_edge"], p["b_edge"].reshape(1, H),
      src_oh, dst_oh_en, dst_oh_ne, indeg,
      node_factor, edge_factor,
      nseg, nsegT, ninvn, ninvnm1,
      eseg, esegT, einvn, einvnm1,
      p["gamma_n"].reshape(1, H), p["beta_n"].reshape(1, H),
      p["gamma_e"].reshape(1, H), p["beta_e"].reshape(1, H))


def _readout_kernel(x_ref, w1_ref, b1_ref, w2_ref, b2_ref, w3_ref, b3_ref, o_ref):
    bf16 = jnp.bfloat16
    f32 = jnp.float32
    h = jnp.maximum(jnp.dot(x_ref[...].astype(bf16), w1_ref[...].astype(bf16),
                            preferred_element_type=f32) + b1_ref[...], 0.0)
    h = jnp.maximum(jnp.dot(h.astype(bf16), w2_ref[...].astype(bf16),
                            preferred_element_type=f32) + b2_ref[...], 0.0)
    o_ref[...] = jnp.dot(h.astype(bf16), w3_ref[...].astype(bf16),
                         preferred_element_type=f32) + b3_ref[...]


def pallas_readout(p, x):
    n = x.shape[0]
    cls = p[2]["w"].shape[1]
    return pl.pallas_call(
        _readout_kernel,
        out_shape=jax.ShapeDtypeStruct((n, cls), jnp.float32),
        in_specs=[_vmem()] * 7,
        out_specs=_vmem(),
    )(x, p[0]["w"], p[0]["b"].reshape(1, -1),
      p[1]["w"], p[1]["b"].reshape(1, -1),
      p[2]["w"], p[2]["b"].reshape(1, -1))


# ----------------------------------------------------------------------------
# Plain-JAX glue: LSTM recurrence, segment helpers, parameter init
# ----------------------------------------------------------------------------
def lstm_bidir_layer(x, p_fwd, p_bwd, lengths):
    """Bidirectional masked LSTM layer (packed-sequence equivalent).
    Both directions share one Pallas input projection and one lax.scan."""
    B, T, in_dim = x.shape
    H = p_fwd["w_hh"].shape[0]

    # fused input projection for both directions: [B*T, in] @ [in, 8H] (lane-dense)
    w_ih = jnp.concatenate([p_fwd["w_ih"], p_bwd["w_ih"]], axis=1)
    b_ih = jnp.concatenate([p_fwd["b_ih"], p_bwd["b_ih"]], axis=0)
    proj = pallas_linear(x.reshape(B * T, in_dim), w_ih, b_ih).reshape(B, T, 8 * H)
    proj_f = proj[:, :, :4 * H]
    proj_b = proj[:, :, 4 * H:][:, ::-1]          # backward direction: reversed time
    xs = jnp.concatenate([proj_f, proj_b], axis=-1).transpose(1, 0, 2)  # [T, B, 8H]

    # block-diagonal recurrent weight -> single [B,2H]@[2H,8H] matmul per step
    w_hh = jnp.zeros((2 * H, 8 * H), jnp.float32)
    w_hh = w_hh.at[:H, :4 * H].set(p_fwd["w_hh"]).at[H:, 4 * H:].set(p_bwd["w_hh"])
    b_hh = jnp.concatenate([p_fwd["b_hh"], p_bwd["b_hh"]], axis=0)

    ts = jnp.arange(T)
    valid_f = ts[None, :] < lengths[:, None]                  # [B, T]
    valid_b = valid_f[:, ::-1]                                # step s handles time T-1-s
    masks = jnp.stack([valid_f, valid_b], axis=-1).transpose(1, 0, 2)  # [T, B, 2]

    def step(carry, inp):
        h, c = carry                                          # [B, 2, H] each
        x_t, m = inp                                          # [B, 8H], [B, 2]
        # TODO(synk): recurrent matmul stays in lax.scan (strictly sequential), not Pallas.
        gates = x_t + jnp.dot(h.reshape(B, 2 * H), w_hh) + b_hh
        gates = gates.reshape(B, 2, 4, H)                     # [batch, dir, gate, H]
        i = jax.nn.sigmoid(gates[:, :, 0])
        f = jax.nn.sigmoid(gates[:, :, 1])
        g = jnp.tanh(gates[:, :, 2])
        o = jax.nn.sigmoid(gates[:, :, 3])
        c_new = f * c + i * g
        h_new = o * jnp.tanh(c_new)
        m3 = m[:, :, None].astype(h.dtype)
        h2 = m3 * h_new + (1.0 - m3) * h
        c2 = m3 * c_new + (1.0 - m3) * c
        return (h2, c2), h2 * m3                              # zero padded outputs

    init = (jnp.zeros((B, 2, H), jnp.float32), jnp.zeros((B, 2, H), jnp.float32))
    (h_fin, _), hs = jax.lax.scan(step, init, (xs, masks))
    out_f = hs[:, :, 0].transpose(1, 0, 2)                    # [B, T, H]
    out_b = hs[::-1, :, 1].transpose(1, 0, 2)                 # un-reverse backward dir
    out = jnp.concatenate([out_f, out_b], axis=-1)            # [B, T, 2H]
    return out, h_fin[:, 0], h_fin[:, 1]


def lstm_text_embedding(params, texts, lengths):
    emb = params["embedding"][texts]                          # [B, T, H] gather glue
    x = emb
    h_lasts = []
    for layer in range(2):
        p_f, p_b = params["lstm"][layer]
        x, hf, hb = lstm_bidir_layer(x, p_f, p_b, lengths)
        h_lasts += [hf, hb]
    h_mean = jnp.mean(jnp.stack(h_lasts, 0), axis=0)          # h_last.mean(0)
    norm = jnp.sqrt(jnp.sum(h_mean * h_mean, axis=1, keepdims=True))
    return h_mean / jnp.maximum(norm, 1e-12)                  # F.normalize(dim=1)


def build_segment_aux(sizes, total):
    sizes_np = np.asarray(sizes, dtype=np.float32)
    seg_ids = np.repeat(np.arange(len(sizes)), np.asarray(sizes, dtype=np.int64))
    seg = np.zeros((len(sizes), total), dtype=np.float32)
    seg[seg_ids, np.arange(total)] = 1.0
    inv_n = (1.0 / sizes_np)[:, None]
    # torch.std is unbiased (n-1); guard n==1 (reference would emit NaN there)
    inv_nm1 = (1.0 / np.maximum(sizes_np - 1.0, 1.0))[:, None]
    return (jnp.asarray(seg), jnp.asarray(seg.T),
            jnp.asarray(inv_n), jnp.asarray(inv_nm1))


class KeyGen:
    def __init__(self, seed=0):
        self.key = jax.random.PRNGKey(seed)

    def __call__(self):
        self.key, sub = jax.random.split(self.key)
        return sub


def init_linear(kg, fan_in, fan_out):
    s = 1.0 / np.sqrt(fan_in)
    return {
        "w": jax.random.uniform(kg(), (fan_in, fan_out), jnp.float32, -s, s),
        "b": jax.random.uniform(kg(), (fan_out,), jnp.float32, -s, s),
    }


def init_params(vocab, class_num, edge_channel, H, layer_num, seed=0):
    kg = KeyGen(seed)
    params = {}
    params["embedding"] = jax.random.normal(kg(), (vocab, H), jnp.float32)
    params["edge_emb"] = init_linear(kg, edge_channel, H)

    lstm = []
    for layer in range(2):
        in_size = H if layer == 0 else 2 * H
        s = 1.0 / np.sqrt(H)
        dirs = []
        for _ in range(2):  # forward / backward
            dirs.append({
                "w_ih": jax.random.uniform(kg(), (in_size, 4 * H), jnp.float32, -s, s),
                "w_hh": jax.random.uniform(kg(), (H, 4 * H), jnp.float32, -s, s),
                "b_ih": jax.random.uniform(kg(), (4 * H,), jnp.float32, -s, s),
                "b_hh": jax.random.uniform(kg(), (4 * H,), jnp.float32, -s, s),
            })
        lstm.append(dirs)
    params["lstm"] = lstm

    gcn = []
    for _ in range(layer_num):
        fcs = [init_linear(kg, H, H) for _ in range(5)]
        gcn.append({
            # fc[0..3] (Av,Bv,Dv,Ev) fused into one [H,4H] weight
            "w_node4": jnp.concatenate([fcs[i]["w"] for i in range(4)], axis=1),
            "b_node4": jnp.concatenate([fcs[i]["b"] for i in range(4)], axis=0),
            "w_edge": fcs[4]["w"], "b_edge": fcs[4]["b"],
            "gamma_n": jnp.ones((H,), jnp.float32), "beta_n": jnp.zeros((H,), jnp.float32),
            "gamma_e": jnp.ones((H,), jnp.float32), "beta_e": jnp.zeros((H,), jnp.float32),
        })
    params["gcn"] = gcn

    dense = []
    for i in range(1, layer_num + 1):
        in_ch = H + i * H
        d = init_linear(kg, in_ch, H)
        d["ln_gamma"] = jnp.ones((in_ch,), jnp.float32)
        d["ln_beta"] = jnp.zeros((in_ch,), jnp.float32)
        dense.append(d)
    params["dense"] = dense

    params["readout"] = [init_linear(kg, H, H // 2),
                         init_linear(kg, H // 2, H // 4),
                         init_linear(kg, H // 4, class_num)]
    return params


# ----------------------------------------------------------------------------
# Model forward (mirrors BRegGraph.forward)
# ----------------------------------------------------------------------------
def breg_graph_forward(params, src, dst, nodes_in, edges_in, texts, lengths,
                       node_factors, edge_factors, node_sizes, edge_sizes, layer_num):
    del nodes_in  # the PyTorch forward overwrites `nodes` with the text embedding
    N = int(node_factors.shape[0])
    E = int(edges_in.shape[0])
    H = int(params["embedding"].shape[1])

    # loop-invariant graph-structure auxiliaries, built once
    src_oh = jax.nn.one_hot(src, N, dtype=jnp.bfloat16)                 # [E, N]
    dst_oh_f32 = jax.nn.one_hot(dst, N, dtype=jnp.float32)              # [E, N]
    indeg = jnp.sum(dst_oh_f32, axis=0).reshape(N, 1)                   # precomputed in-degree
    dst_oh_en = dst_oh_f32.astype(jnp.bfloat16)                         # [E, N]
    dst_oh_ne = jnp.transpose(dst_oh_f32).astype(jnp.bfloat16)          # [N, E]
    node_aux = build_segment_aux(node_sizes, N)
    edge_aux = build_segment_aux(edge_sizes, E)

    edges = pallas_linear(edges_in, params["edge_emb"]["w"], params["edge_emb"]["b"])
    nodes = lstm_text_embedding(params, texts, lengths)

    all_node = [nodes]
    for i in range(layer_num):
        new_nodes, edges = gated_gcn_layer(params["gcn"][i], nodes, edges,
                                           src_oh, dst_oh_en, dst_oh_ne, indeg,
                                           node_factors, edge_factors,
                                           node_aux, edge_aux, H)
        all_node.append(new_nodes)
        cat = jnp.concatenate(all_node, axis=1)
        d = params["dense"][i]
        nodes = pallas_dense(cat, d["ln_gamma"], d["ln_beta"], d["w"], d["b"])

    return pallas_readout(params["readout"], nodes)


# ----------------------------------------------------------------------------
if __name__ == "__main__":
    vocab, class_num = 50, 3
    node_channel, edge_channel = 16, 6          # node_channel unused by forward
    hidden_channel, layer_num = 32, 2
    N, E, T = 8, 16, 10
    node_sizes = [5, 3]                          # two graphs in the batch
    edge_sizes = [10, 6]

    # graph 1: nodes 0..4, graph 2: nodes 5..7 (edges stay within each graph)
    src = jnp.array([0, 1, 2, 3, 4, 0, 1, 2, 3, 4, 5, 6, 7, 5, 6, 7], dtype=jnp.int32)
    dst = jnp.array([1, 2, 3, 4, 0, 2, 3, 4, 0, 1, 6, 7, 5, 7, 5, 6], dtype=jnp.int32)

    key = jax.random.PRNGKey(0)
    k1, k2, k3, k4, k5 = jax.random.split(key, 5)
    nodes_in = jax.random.normal(k1, (N, node_channel), jnp.float32)
    edges_in = jax.random.normal(k2, (E, edge_channel), jnp.float32)
    texts = jax.random.randint(k3, (N, T), 0, vocab)
    lengths = jnp.array([10, 7, 9, 5, 10, 3, 8, 6], dtype=jnp.int32)
    node_factors = jax.random.uniform(k4, (N, 1), jnp.float32)
    edge_factors = jax.random.uniform(k5, (E, 1), jnp.float32)

    params = init_params(vocab, class_num, edge_channel, hidden_channel, layer_num)

    out = breg_graph_forward(params, src, dst, nodes_in, edges_in, texts, lengths,
                             node_factors, edge_factors, node_sizes, edge_sizes,
                             layer_num=layer_num)
    out = jax.block_until_ready(out)
    assert out.shape == (N, class_num), out.shape
    assert jnp.all(jnp.isfinite(out))
    print("KERNEL_OK")
</pallas_src>

<mosaic_0001>
module attributes {stable_mosaic.version = 11 : i64} {
  func.func @_linear_kernel(%arg0: memref<16x6xf32, #tpu.memory_space<vmem>>, %arg1: memref<6x32xf32, #tpu.memory_space<vmem>>, %arg2: memref<1x32xf32, #tpu.memory_space<vmem>>, %arg3: memref<16x32xf32, #tpu.memory_space<vmem>>) attributes {dimension_semantics = [], scalar_prefetch = 0 : i64, scratch_operands = 0 : i64, tpu.core_type = #tpu.core_type<tc>} {
    %c0 = arith.constant 0 : index
    %c0_0 = arith.constant 0 : index
    %0 = vector.load %arg0[%c0, %c0_0] : memref<16x6xf32, #tpu.memory_space<vmem>>, vector<16x6xf32>
    %1 = arith.truncf %0 : vector<16x6xf32> to vector<16x6xbf16>
    %c0_1 = arith.constant 0 : index
    %c0_2 = arith.constant 0 : index
    %2 = vector.load %arg1[%c0_1, %c0_2] : memref<6x32xf32, #tpu.memory_space<vmem>>, vector<6x32xf32>
    %3 = arith.truncf %2 : vector<6x32xf32> to vector<6x32xbf16>
    %cst = arith.constant dense<0.000000e+00> : vector<16x32xf32>
    %4 = tpu.matmul %1, %3, %cst {dimension_numbers = #tpu.dot_dimension_numbers<[1], [0], [0], [1], [0, 0, 1, 1], [], []>} : vector<16x6xbf16>, vector<6x32xbf16>, vector<16x32xf32> -> vector<16x32xf32>
    %c0_3 = arith.constant 0 : index
    %c0_4 = arith.constant 0 : index
    %5 = vector.load %arg2[%c0_3, %c0_4] : memref<1x32xf32, #tpu.memory_space<vmem>>, vector<1x32xf32>
    %6 = vector.broadcast %5 : vector<1x32xf32> to vector<16x32xf32>
    %7 = arith.addf %4, %6 : vector<16x32xf32>
    %c0_5 = arith.constant 0 : index
    %c0_6 = arith.constant 0 : index
    %8 = vector.load %arg3[%c0_5, %c0_6] : memref<16x32xf32, #tpu.memory_space<vmem>>, vector<16x32xf32>
    tpu.vector_store %arg3[%c0_5, %c0_6], %7 {strides = array<i32>} : memref<16x32xf32, #tpu.memory_space<vmem>>, vector<16x32xf32>,
    return
  }
}

</mosaic_0001>

<llo_original>
// kernel: tpu_custom_call.1
$region0: #{tpu_custom_call.1}
  #allocation0 [shape = 'u32[]', space=smem, size = 0x4, offset = 0x4, fixed_abs, tag = 'smem constant byte address 0x4 - core index']
  #allocation1 [shape = 'u32[144,128]{1,0:T(1,128)}', space=vmem, size = 0x12000, scoped, tag = 'internal scratch']
  %s0 = inlined_call_operand.vmem [shape: f32[16,6], index: 0, kind: input, shape index: {}]
  %s1 = inlined_call_operand.vmem [shape: f32[6,32], index: 1, kind: input, shape index: {}]
  %s2 = inlined_call_operand.vmem [shape: f32[1,32], index: 2, kind: input, shape index: {}]
  %s3 = inlined_call_operand.hbm [shape: f32[16,32], index: 3, kind: output, shape index: {}]
  %s4 = sld [smem:[#allocation0]]
  $region22: #{tpu_custom_call.1} parent=0
    _
  %s6 = ssub.s32 1, %s4
  %s7 = scalar_select 0, %s6, %s4
  $region1: #{tpu_custom_call.1} parent=0
    #allocation2 [shape = 'u8[8192]{0}', space=vmem, size = 0x2000, scoped, tag = 'output window, operand 0, single buffered']
    #allocation3 [shape = 's32[1]{0}', space=sflag, size = 0x4, scoped, tag = 'scoped memory for tpu_custom_call.1']
    %8 = vsyncpa [#allocation3], 0
    // Predicated region
    $region2: #{tpu_custom_call.1} parent=1 // pred_check
      _
    $region3: #{tpu_custom_call.1} parent=1 // pred_check_branch
      %10 = sbr.rel (0) target = $region5
    $region4: #{tpu_custom_call.1} parent=1 // pred_region
      _
    $region5: #{tpu_custom_call.1} parent=1 // pred_fallthru
      _
    // Predicated region
    $region6: #{tpu_custom_call.1} parent=1 // pred_check
      _
    $region7: #{tpu_custom_call.1} parent=1 // pred_check_branch
      %12 = sbr.rel (0) target = $region9
    $region8: #{tpu_custom_call.1} parent=1 // pred_region
      _
    $region9: #{tpu_custom_call.1} parent=1 // pred_fallthru
      _
    // Predicated region
    $region10: #{tpu_custom_call.1} parent=1 // pred_check
      _
    $region11: #{tpu_custom_call.1} parent=1 // pred_check_branch
      %14 = sbr.rel (0) target = $region13
    $region12: #{tpu_custom_call.1} parent=1 // pred_region
      _
    $region13: #{tpu_custom_call.1} parent=1 // pred_fallthru
      _
    %v16 = vld [vmem:[%s0] sm:$0xff]
    %v17 = vld [vmem:[%s0 + $0x8] sm:$0xff]
    %v18 = vpack.c.bf16 %v17, %v16
    %v19 = vld [vmem:[%s1] sm:$0x3f]
    %v20 = vpack.c.bf16 %v19, %v19
    %v21 = vld [vmem:[%s2] sm:$0x1]
    %v23 = vlaneseq
    %v24 = vshrl.u32 %v23, 7
    %v25 = vsub.s32 0, %v24
    %v26 = vrot.slane %v21, %v25
    %vm28 = vcmask 48128
    %v30 = vsel %vm28, %v18, 0
    %vm32 = vcmask 1042432
    %v34 = vsel %vm32, %v20, 0
    %36 = vmatprep.subr.bf16.mxu0 0
    %37 = vmatpush1.bf16.msra.mxu0 0
    %38 = vmatprep.subr.bf16.mxu0 0
    %39 = vmatpush1.bf16.msra.mxu0 0
    %40 = vmatprep.subr.bf16.mxu0 0
    %41 = vmatpush1.bf16.msra.mxu0 0
    %42 = vmatprep.subr.bf16.mxu0 0
    %43 = vmatpush1.bf16.msra.mxu0 0
    %44 = vmatprep.subr.bf16.mxu0 0
    %45 = vmatpush1.bf16.msra.mxu0 0
    %46 = vmatprep.subr.bf16.mxu0 0
    %47 = vmatpush1.bf16.msra.mxu0 0
    %48 = vmatprep.subr.bf16.mxu0 0
    %49 = vmatpush1.bf16.msra.mxu0 0
    %50 = vmatprep.subr.bf16.mxu0 0
    %51 = vmatpush1.bf16.msra.mxu0 %v34
    %52 = vmatprep.subr.bf16.mxu0 0
    %53 = vmatpush2.bf16.msra.mxu0 0
    %54 = vmatprep.subr.bf16.mxu0 0
    %55 = vmatpush2.bf16.msra.mxu0 0
    %56 = vmatprep.subr.bf16.mxu0 0
    %57 = vmatpush2.bf16.msra.mxu0 0
    %58 = vmatprep.subr.bf16.mxu0 0
    %59 = vmatpush2.bf16.msra.mxu0 0
    %60 = vmatprep.subr.bf16.mxu0 0
    %61 = vmatpush2.bf16.msra.mxu0 0
    %62 = vmatprep.subr.bf16.mxu0 0
    %63 = vmatpush2.bf16.msra.mxu0 0
    %64 = vmatprep.subr.bf16.mxu0 0
    %65 = vmatpush2.bf16.msra.mxu0 0
    %66 = vmatprep.subr.bf16.mxu0 0
    %67 = vmatpush2.bf16.msra.mxu0 0
    %68 = vmatprep.mubr.bf16.mxu0 0
    %69 = vmatmul.mubr.bf16.gmra.mxu0 %v30
    %v70 = vpop.f32.mrf.mxu0
    %v71 = vadd.f32 %v26, %v70
    %v72 = vpop.f32.mrf.mxu0
    %v73 = vpop.f32.mrf.mxu0
    %v74 = vadd.f32 %v26, %v73
    %v75 = vpop.f32.mrf.mxu0
    %76 = vdwg.mxu0
    %vm77 = vcmask 261120
    %78 = vst.msk [vmem:[#allocation2] sm:$0xff] %vm77, %v71
    %79 = vst.msk [vmem:[#allocation2 + $0x8] sm:$0xff] %vm77, %v74
    // Predicated region
    $region14: #{tpu_custom_call.1} parent=1 // pred_check
      _
    $region15: #{tpu_custom_call.1} parent=1 // pred_check_branch
      %81 = sbr.rel (0) target = $region17
    $region16: #{tpu_custom_call.1} parent=1 // pred_region
      %s83 = ssub.s32 256, 256
      %84 = vsyncadd [#allocation3], %s83
      %s85 = sshll.u32 [#allocation2], 4
      %s86 = int_to_ptr.vmem [resolvable:$true] %s85
      %91 = dma.vmem_to_hbm [thread:$0]  %s86, 256, %s3, [#allocation3], 128, 128, 8
    $region17: #{tpu_custom_call.1} parent=1 // pred_fallthru
      _
    // Predicated region
    $region18: #{tpu_custom_call.1} parent=1 // pred_check
      _
    $region19: #{tpu_custom_call.1} parent=1 // pred_check_branch
      %93 = sbr.rel (0) target = $region21
    $region20: #{tpu_custom_call.1} parent=1 // pred_region
      %94 = dma.done [#allocation3], 256
    $region21: #{tpu_custom_call.1} parent=1 // pred_fallthru
      _
    %95 = vsyncpa [#allocation3], 1

</llo_original>
